<compile_context>
chip_gen: v7x
topology: tpu7x:2x2x1
jax: 0.10.0
libtpu: 0.0.40
codegen_flags: <defaults>
</compile_context>

<pallas_src>
import functools
import math

import jax
import jax.numpy as jnp
from jax import lax
from jax.experimental import pallas as pl
from jax.experimental.pallas import tpu as pltpu


# ----------------------------- configuration --------------------------------
CAT_COLS = ["c0", "c1", "c2"]
CAT_UNIQUE = {"c0": 10, "c1": 7, "c2": 30}
CAT_EMB_DIM = 16
NUM_DIM = 16
FEATURE_DIM = 32


def _emb_dim(unique_count, cat_emb_dim=CAT_EMB_DIM):
    d = min(cat_emb_dim, unique_count // 2 + 1)
    return max(d, 4)


EMB_DIMS = [_emb_dim(CAT_UNIQUE[c]) for c in CAT_COLS]       # [6, 4, 16]
CAT_LEN = len(CAT_COLS)
CAT_OUT_DIM = sum(EMB_DIMS)                                  # 26
CONCAT_DIM = CAT_OUT_DIM + NUM_DIM                           # 42
D_IN = CAT_LEN + NUM_DIM                                     # 19

UNIQUE_SIZES = [CAT_UNIQUE[c] for c in CAT_COLS]             # [10, 7, 30]
K_CAT = sum(UNIQUE_SIZES)                                    # 47
K_CAT_PAD = 64                                               # stacked-table rows, padded
ROW_OFFSETS = [0]
for _u in UNIQUE_SIZES[:-1]:
    ROW_OFFSETS.append(ROW_OFFSETS[-1] + _u)                 # [0, 10, 17]


# ------------------------------- kernel -------------------------------------
def _feature_embedder_kernel(cat_ref,    # (TILE_N, CAT_LEN) int32, offsets pre-added
                             num_ref,    # (TILE_N, NUM_DIM)  f32
                             wcat_ref,   # (K_CAT_PAD, FEATURE_DIM) f32 fused tables
                             wnum_ref,   # (NUM_DIM, FEATURE_DIM)   f32 fused num weight
                             bias_ref,   # (1, FEATURE_DIM)         f32 fused bias
                             o_ref,      # (TILE_N, FEATURE_DIM)
                             *, tile_n):
    # Combined one-hot over the stacked (offset) table rows: 3 ones per row.
    iota = lax.broadcasted_iota(jnp.int32, (tile_n, K_CAT_PAD), 1)
    cat = cat_ref[...]
    onehot = (iota == cat[:, 0:1])
    for i in range(1, CAT_LEN):
        onehot = onehot | (iota == cat[:, i:i + 1])
    onehot = onehot.astype(jnp.float32)

    acc = jnp.dot(onehot, wcat_ref[...], preferred_element_type=jnp.float32)
    acc = acc + jnp.dot(num_ref[...], wnum_ref[...],
                        preferred_element_type=jnp.float32)
    acc = acc + bias_ref[...]
    o_ref[...] = acc.astype(o_ref.dtype)


# --------------------------- parameter fusion --------------------------------
def fuse_params(params):
    """Fold num_linear and out_linear into the embedding tables (do once)."""
    emb_tables = params["emb_tables"]                  # list of (U_i, d_i)
    w_num = params["w_num"]                            # (NUM_DIM, NUM_DIM)
    b_num = params["b_num"]                            # (NUM_DIM,)
    w_out = params["w_out"]                            # (FEATURE_DIM, CONCAT_DIM)
    b_out = params["b_out"]                            # (FEATURE_DIM,)

    col = 0
    fused_tabs = []
    for i in range(CAT_LEN):
        d = EMB_DIMS[i]
        w_slice = w_out[:, col:col + d]                # (FEATURE_DIM, d)
        fused_tabs.append(emb_tables[i] @ w_slice.T)   # (U_i, FEATURE_DIM)
        col += d
    w_out_num = w_out[:, col:col + NUM_DIM]            # (FEATURE_DIM, NUM_DIM)

    pad_rows = K_CAT_PAD - K_CAT
    w_cat = jnp.concatenate(
        fused_tabs + [jnp.zeros((pad_rows, FEATURE_DIM), jnp.float32)], axis=0)
    w_num_fused = w_num.T @ w_out_num.T                # (NUM_DIM, FEATURE_DIM)
    b_fused = (b_num @ w_out_num.T + b_out).reshape(1, FEATURE_DIM)
    return {"w_cat": w_cat, "w_num": w_num_fused, "bias": b_fused}


# ------------------------------- wrapper -------------------------------------
def feature_embedder(x, fused_params, *, tile_n=1024):
    """x: (..., CAT_LEN + NUM_DIM) float32 -> (..., FEATURE_DIM) float32."""
    lead_shape = x.shape[:-1]
    n = int(math.prod(lead_shape)) if lead_shape else 1
    x2 = x.reshape(n, D_IN)

    # Split + cast + add stacked-table offsets once, in HBM (XLA side).
    cat_idx = x2[:, :CAT_LEN].astype(jnp.int32)
    cat_off = cat_idx + jnp.asarray(ROW_OFFSETS, jnp.int32)[None, :]
    num_x = x2[:, CAT_LEN:]

    # Tile selection: big tiles (multiple of 8), but keep >=2 grid steps when
    # possible so v7x's two TensorCores both get work.
    tile = min(tile_n, max(8, -(-n // 2)))
    tile = ((tile + 7) // 8) * 8
    n_pad = ((n + tile - 1) // tile) * tile
    if n_pad != n:
        cat_off = jnp.pad(cat_off, ((0, n_pad - n), (0, 0)))
        num_x = jnp.pad(num_x, ((0, n_pad - n), (0, 0)))

    kernel = functools.partial(_feature_embedder_kernel, tile_n=tile)
    grid = (n_pad // tile,)

    w_cat = fused_params["w_cat"]
    w_num = fused_params["w_num"]
    bias = fused_params["bias"]

    out = pl.pallas_call(
        kernel,
        out_shape=jax.ShapeDtypeStruct((n_pad, FEATURE_DIM), jnp.float32),
        grid=grid,
        in_specs=[
            pl.BlockSpec((tile, CAT_LEN), lambda i: (i, 0)),
            pl.BlockSpec((tile, NUM_DIM), lambda i: (i, 0)),
            pl.BlockSpec((K_CAT_PAD, FEATURE_DIM), lambda i: (0, 0)),
            pl.BlockSpec((NUM_DIM, FEATURE_DIM), lambda i: (0, 0)),
            pl.BlockSpec((1, FEATURE_DIM), lambda i: (0, 0)),
        ],
        out_specs=pl.BlockSpec((tile, FEATURE_DIM), lambda i: (i, 0)),
        compiler_params=pltpu.CompilerParams(
            dimension_semantics=("parallel",)),
    )(cat_off, num_x, w_cat, w_num, bias)

    out = out[:n]
    return out.reshape(*lead_shape, FEATURE_DIM)


# --------------------------- reference (pure JAX) -----------------------------
def feature_embedder_ref(x, params):
    cat_x = x[..., :CAT_LEN].astype(jnp.int32)
    num_x = x[..., CAT_LEN:]
    embs = [jnp.take(params["emb_tables"][i], cat_x[..., i], axis=0)
            for i in range(CAT_LEN)]
    cat_emb = jnp.concatenate(embs, axis=-1)
    num_emb = num_x @ params["w_num"].T + params["b_num"]
    feat = jnp.concatenate([cat_emb, num_emb], axis=-1)
    return feat @ params["w_out"].T + params["b_out"]


# ------------------------------- main -----------------------------------------
if __name__ == "__main__":
    key = jax.random.PRNGKey(0)
    keys = jax.random.split(key, 16)

    # deterministic parameter init (shapes match the PyTorch module __init__)
    emb_tables = []
    for i, c in enumerate(CAT_COLS):
        emb_tables.append(
            jax.random.normal(keys[i], (CAT_UNIQUE[c], EMB_DIMS[i]), jnp.float32) * 0.1)
    params = {
        "emb_tables": emb_tables,
        "w_num": jax.random.normal(keys[4], (NUM_DIM, NUM_DIM), jnp.float32) * 0.1,
        "b_num": jax.random.normal(keys[5], (NUM_DIM,), jnp.float32) * 0.1,
        "w_out": jax.random.normal(keys[6], (FEATURE_DIM, CONCAT_DIM), jnp.float32) * 0.1,
        "b_out": jax.random.normal(keys[7], (FEATURE_DIM,), jnp.float32) * 0.1,
    }

    # One-time fusion of both Linear layers into the embedding tables.
    fused = jax.tree_util.tree_map(jax.block_until_ready, fuse_params(params))

    # deterministic input: (batch=2, seq=8, CAT_LEN + NUM_DIM)
    batch, seq = 2, 8
    cat_part = jnp.stack(
        [jax.random.randint(keys[8 + i], (batch, seq), 0, CAT_UNIQUE[c]).astype(jnp.float32)
         for i, c in enumerate(CAT_COLS)], axis=-1)                     # (2, 8, 3)
    num_part = jax.random.normal(keys[12], (batch, seq, NUM_DIM), jnp.float32)
    x = jnp.concatenate([cat_part, num_part], axis=-1)                  # (2, 8, 19)

    out = feature_embedder(x, fused)
    out = jax.block_until_ready(out)

    ref = feature_embedder_ref(x, params)
    assert out.shape == (batch, seq, FEATURE_DIM)
    # NOTE: linear-fusion reassociates f32 sums; differences are ~1e-6 at these scales.
    assert jnp.allclose(out, ref, atol=1e-4, rtol=1e-4), "mismatch vs reference"

    print("KERNEL_OK")
</pallas_src>

<mosaic_0001>
module attributes {stable_mosaic.version = 11 : i64} {
  func.func @_feature_embedder_kernel(%arg0: i32, %arg1: memref<8x3xi32, #tpu.memory_space<vmem>>, %arg2: memref<8x16xf32, #tpu.memory_space<vmem>>, %arg3: memref<64x32xf32, #tpu.memory_space<vmem>>, %arg4: memref<16x32xf32, #tpu.memory_space<vmem>>, %arg5: memref<1x32xf32, #tpu.memory_space<vmem>>, %arg6: memref<8x32xf32, #tpu.memory_space<vmem>>) attributes {dimension_semantics = [#tpu.dimension_semantics<parallel>], iteration_bounds = array<i64: 2>, scalar_prefetch = 0 : i64, scratch_operands = 0 : i64, tpu.core_type = #tpu.core_type<tc>, window_params = [{transform_indices = @transform_0, window_bounds = array<i64: 8, 3>}, {transform_indices = @transform_1, window_bounds = array<i64: 8, 16>}, {pipeline_mode = #tpu.pipeline_mode<synchronous>, transform_indices = @transform_2, window_bounds = array<i64: 64, 32>}, {pipeline_mode = #tpu.pipeline_mode<synchronous>, transform_indices = @transform_3, window_bounds = array<i64: 16, 32>}, {pipeline_mode = #tpu.pipeline_mode<synchronous>, transform_indices = @transform_4, window_bounds = array<i64: 1, 32>}, {transform_indices = @transform_5, window_bounds = array<i64: 8, 32>}]} {
    %0 = tpu.iota {dimensions = array<i32: 1>} : vector<8x64xi32>
    %c0 = arith.constant 0 : index
    %c0_0 = arith.constant 0 : index
    %1 = vector.load %arg1[%c0, %c0_0] : memref<8x3xi32, #tpu.memory_space<vmem>>, vector<8x3xi32>
    %2 = vector.extract_strided_slice %1 {offsets = [0, 0], sizes = [8, 1], strides = [1, 1]} : vector<8x3xi32> to vector<8x1xi32>
    %3 = vector.broadcast %2 : vector<8x1xi32> to vector<8x64xi32>
    %4 = arith.cmpi eq, %0, %3 : vector<8x64xi32>
    %5 = vector.extract_strided_slice %1 {offsets = [0, 1], sizes = [8, 1], strides = [1, 1]} : vector<8x3xi32> to vector<8x1xi32>
    %6 = vector.broadcast %5 : vector<8x1xi32> to vector<8x64xi32>
    %7 = arith.cmpi eq, %0, %6 : vector<8x64xi32>
    %8 = arith.ori %4, %7 : vector<8x64xi1>
    %9 = vector.extract_strided_slice %1 {offsets = [0, 2], sizes = [8, 1], strides = [1, 1]} : vector<8x3xi32> to vector<8x1xi32>
    %10 = vector.broadcast %9 : vector<8x1xi32> to vector<8x64xi32>
    %11 = arith.cmpi eq, %0, %10 : vector<8x64xi32>
    %12 = arith.ori %8, %11 : vector<8x64xi1>
    %13 = arith.extui %12 : vector<8x64xi1> to vector<8x64xi32>
    %14 = arith.sitofp %13 : vector<8x64xi32> to vector<8x64xf32>
    %c0_1 = arith.constant 0 : index
    %c0_2 = arith.constant 0 : index
    %15 = vector.load %arg3[%c0_1, %c0_2] : memref<64x32xf32, #tpu.memory_space<vmem>>, vector<64x32xf32>
    %cst = arith.constant dense<0.000000e+00> : vector<8x32xf32>
    %16 = tpu.matmul %14, %15, %cst {dimension_numbers = #tpu.dot_dimension_numbers<[1], [0], [0], [1], [0, 0, 1, 1], [], []>} : vector<8x64xf32>, vector<64x32xf32>, vector<8x32xf32> -> vector<8x32xf32>
    %c0_3 = arith.constant 0 : index
    %c0_4 = arith.constant 0 : index
    %17 = vector.load %arg2[%c0_3, %c0_4] : memref<8x16xf32, #tpu.memory_space<vmem>>, vector<8x16xf32>
    %c0_5 = arith.constant 0 : index
    %c0_6 = arith.constant 0 : index
    %18 = vector.load %arg4[%c0_5, %c0_6] : memref<16x32xf32, #tpu.memory_space<vmem>>, vector<16x32xf32>
    %cst_7 = arith.constant dense<0.000000e+00> : vector<8x32xf32>
    %19 = tpu.matmul %17, %18, %cst_7 {dimension_numbers = #tpu.dot_dimension_numbers<[1], [0], [0], [1], [0, 0, 1, 1], [], []>} : vector<8x16xf32>, vector<16x32xf32>, vector<8x32xf32> -> vector<8x32xf32>
    %20 = arith.addf %16, %19 : vector<8x32xf32>
    %c0_8 = arith.constant 0 : index
    %c0_9 = arith.constant 0 : index
    %21 = vector.load %arg5[%c0_8, %c0_9] : memref<1x32xf32, #tpu.memory_space<vmem>>, vector<1x32xf32>
    %22 = vector.broadcast %21 : vector<1x32xf32> to vector<8x32xf32>
    %23 = arith.addf %20, %22 : vector<8x32xf32>
    %c0_10 = arith.constant 0 : index
    %c0_11 = arith.constant 0 : index
    %24 = vector.load %arg6[%c0_10, %c0_11] : memref<8x32xf32, #tpu.memory_space<vmem>>, vector<8x32xf32>
    tpu.vector_store %arg6[%c0_10, %c0_11], %23 {strides = array<i32>} : memref<8x32xf32, #tpu.memory_space<vmem>>, vector<8x32xf32>,
    return
  }
  func.func @transform_0(%arg0: i32) -> (i32, i32) {
    %c0_i32 = arith.constant 0 : i32
    %c0_i32_0 = arith.constant 0 : i32
    return %arg0, %c0_i32 : i32, i32
  }
  func.func @transform_1(%arg0: i32) -> (i32, i32) {
    %c0_i32 = arith.constant 0 : i32
    %c0_i32_0 = arith.constant 0 : i32
    return %arg0, %c0_i32 : i32, i32
  }
  func.func @transform_2(%arg0: i32) -> (i32, i32) {
    %c0_i32 = arith.constant 0 : i32
    %c0_i32_0 = arith.constant 0 : i32
    %c0_i32_1 = arith.constant 0 : i32
    return %c0_i32, %c0_i32_0 : i32, i32
  }
  func.func @transform_3(%arg0: i32) -> (i32, i32) {
    %c0_i32 = arith.constant 0 : i32
    %c0_i32_0 = arith.constant 0 : i32
    %c0_i32_1 = arith.constant 0 : i32
    return %c0_i32, %c0_i32_0 : i32, i32
  }
  func.func @transform_4(%arg0: i32) -> (i32, i32) {
    %c0_i32 = arith.constant 0 : i32
    %c0_i32_0 = arith.constant 0 : i32
    %c0_i32_1 = arith.constant 0 : i32
    return %c0_i32, %c0_i32_0 : i32, i32
  }
  func.func @transform_5(%arg0: i32) -> (i32, i32) {
    %c0_i32 = arith.constant 0 : i32
    %c0_i32_0 = arith.constant 0 : i32
    return %arg0, %c0_i32 : i32, i32
  }
}

</mosaic_0001>

<llo_original>
// kernel: tpu_custom_call.1
$region0: #{tpu_custom_call.1}
  #allocation0 [shape = 'u32[]', space=smem, size = 0x4, offset = 0x4, fixed_abs, tag = 'smem constant byte address 0x4 - core index']
  #allocation1 [shape = 'u32[144,128]{1,0:T(1,128)}', space=vmem, size = 0x12000, scoped, tag = 'internal scratch']
  %s0 = inlined_call_operand.vmem [shape: s32[16,3], index: 0, kind: input, shape index: {}]
  %s1 = inlined_call_operand.vmem [shape: f32[16,16], index: 1, kind: input, shape index: {}]
  %s2 = inlined_call_operand.vmem [shape: f32[64,32], index: 2, kind: input, shape index: {}]
  %s3 = inlined_call_operand.vmem [shape: f32[16,32], index: 3, kind: input, shape index: {}]
  %s4 = inlined_call_operand.vmem [shape: f32[1,32], index: 4, kind: input, shape index: {}]
  %s5 = inlined_call_operand.hbm [shape: f32[16,32], index: 5, kind: output, shape index: {}]
  %s6 = sld [smem:[#allocation0]]
  $region53: #{tpu_custom_call.1} parent=0
    _
  %s8 = ssub.s32 1, %s6
  %s9 = scalar_select 0, %s8, %s6
  $region1: #{tpu_custom_call.1} parent=0
    #allocation2 [shape = 'u8[8192]{0}', space=vmem, size = 0x2000, scoped, tag = 'output window, operand 0']
    #allocation3 [shape = 's32[2]{0}', space=sflag, size = 0x8, scoped, tag = 'scoped memory for tpu_custom_call.1']
    %10 = vsyncpa [#allocation3], 0
    %s11 = scalar_lea.sflag [#allocation3], 1
    %12 = vsyncpa %s11, 0
    loop: start=0, step=1, limit=4
    $region2: #{tpu_custom_call.1} parent=1 // loop_pre_header
      _
    $region3: #{tpu_custom_call.1} parent=1 // loop_header
      %s14 = sphi 0, %s18
      %p15 = scmp.ge.s32.totalorder %s14, 4
      %s24 = sphi 0, %s26
      %s27 = sphi 0, %s24
      %s28 = sphi 0, %s27
      %s44 = sphi 0, %s28
      %s50 = sphi 0, %s52
      %s53 = sphi 0, %s50
      %s54 = sphi 0, %s53
      %s70 = sphi 0, %s54
      %s74 = sphi 0, %s74
      %s76 = sphi 0, %s74
      %s77 = sphi 0, %s76
      %s91 = sphi 0, %s77
      %s95 = sphi 0, %s95
      %s97 = sphi 0, %s95
      %s98 = sphi 0, %s97
      %s112 = sphi 0, %s98
      %s116 = sphi 0, %s116
      %s118 = sphi 0, %s116
      %s119 = sphi 0, %s118
      %s133 = sphi 0, %s119
      %s139 = sphi 0, %s141
      %s142 = sphi 0, %s139
      %s143 = sphi 0, %s142
      %s159 = sphi 0, %s143
    $region4: #{tpu_custom_call.1} parent=1 // loop_header_branch
      %17 = sbr.rel (%p15) target = $region8
    $region5: #{tpu_custom_call.1} parent=1 // loop_body
      %s19 = ssub.s32 %s14, 1
      %s20 = ssub.s32 %s14, 2
      %s21 = sadd.s32 %s14, 1
      %s22 = ssub.s32 %s14, %s21
      %p23 = scmp.eq.s32.totalorder %s22, 0
      %s25 = sadd.s32 %s24, 1
      %s26 = scalar_select %p23, %s24, %s25
      %p29 = pneg %p23
      %p30 = scmp.eq.s32.totalorder %s14, 1
      %p31 = por %p29, %p30
      %p32 = scmp.ne.s32.totalorder %s24, %s27
      %p33 = scmp.eq.s32.totalorder %s14, 0
      %p34 = por %p32, %p33
      %p35 = scmp.ne.s32.totalorder %s24, %s27
      %p36 = scmp.eq.s32.totalorder %s19, 1
      %p37 = por %p35, %p36
      %p38 = scmp.ne.s32.totalorder %s27, %s28
      %p39 = scmp.eq.s32.totalorder %s19, 0
      %p40 = por %p38, %p39
      %p41 = scmp.ne.s32.totalorder %s27, %s28
      %p42 = scmp.eq.s32.totalorder %s20, 1
      %p43 = por %p41, %p42
      %p45 = scmp.ne.s32.totalorder %s28, %s44
      %p46 = scmp.eq.s32.totalorder %s20, 0
      %p47 = por %p45, %p46
      %s48 = ssub.s32 %s14, %s21
      %p49 = scmp.eq.s32.totalorder %s48, 0
      %s51 = sadd.s32 %s50, 1
      %s52 = scalar_select %p49, %s50, %s51
      %p55 = pneg %p49
      %p56 = scmp.eq.s32.totalorder %s14, 1
      %p57 = por %p55, %p56
      %p58 = scmp.ne.s32.totalorder %s50, %s53
      %p59 = scmp.eq.s32.totalorder %s14, 0
      %p60 = por %p58, %p59
      %p61 = scmp.ne.s32.totalorder %s50, %s53
      %p62 = scmp.eq.s32.totalorder %s19, 1
      %p63 = por %p61, %p62
      %p64 = scmp.ne.s32.totalorder %s53, %s54
      %p65 = scmp.eq.s32.totalorder %s19, 0
      %p66 = por %p64, %p65
      %p67 = scmp.ne.s32.totalorder %s53, %s54
      %p68 = scmp.eq.s32.totalorder %s20, 1
      %p69 = por %p67, %p68
      %p71 = scmp.ne.s32.totalorder %s54, %s70
      %p72 = scmp.eq.s32.totalorder %s20, 0
      %p73 = por %p71, %p72
      %s75 = sadd.s32 %s74, 1
      %p78 = scmp.eq.s32.totalorder %s14, 1
      %p79 = scmp.ne.s32.totalorder %s74, %s76
      %p80 = scmp.eq.s32.totalorder %s14, 0
      %p81 = por %p79, %p80
      %p82 = scmp.ne.s32.totalorder %s74, %s76
      %p83 = scmp.eq.s32.totalorder %s19, 1
      %p84 = por %p82, %p83
      %p85 = scmp.ne.s32.totalorder %s76, %s77
      %p86 = scmp.eq.s32.totalorder %s19, 0
      %p87 = por %p85, %p86
      %p88 = scmp.ne.s32.totalorder %s76, %s77
      %p89 = scmp.eq.s32.totalorder %s20, 1
      %p90 = por %p88, %p89
      %p92 = scmp.ne.s32.totalorder %s77, %s91
      %p93 = scmp.eq.s32.totalorder %s20, 0
      %p94 = por %p92, %p93
      %s96 = sadd.s32 %s95, 1
      %p99 = scmp.eq.s32.totalorder %s14, 1
      %p100 = scmp.ne.s32.totalorder %s95, %s97
      %p101 = scmp.eq.s32.totalorder %s14, 0
      %p102 = por %p100, %p101
      %p103 = scmp.ne.s32.totalorder %s95, %s97
      %p104 = scmp.eq.s32.totalorder %s19, 1
      %p105 = por %p103, %p104
      %p106 = scmp.ne.s32.totalorder %s97, %s98
      %p107 = scmp.eq.s32.totalorder %s19, 0
      %p108 = por %p106, %p107
      %p109 = scmp.ne.s32.totalorder %s97, %s98
      %p110 = scmp.eq.s32.totalorder %s20, 1
      %p111 = por %p109, %p110
      %p113 = scmp.ne.s32.totalorder %s98, %s112
      %p114 = scmp.eq.s32.totalorder %s20, 0
      %p115 = por %p113, %p114
      %s117 = sadd.s32 %s116, 1
      %p120 = scmp.eq.s32.totalorder %s14, 1
      %p121 = scmp.ne.s32.totalorder %s116, %s118
      %p122 = scmp.eq.s32.totalorder %s14, 0
      %p123 = por %p121, %p122
      %p124 = scmp.ne.s32.totalorder %s116, %s118
      %p125 = scmp.eq.s32.totalorder %s19, 1
      %p126 = por %p124, %p125
      %p127 = scmp.ne.s32.totalorder %s118, %s119
      %p128 = scmp.eq.s32.totalorder %s19, 0
      %p129 = por %p127, %p128
      %p130 = scmp.ne.s32.totalorder %s118, %s119
      %p131 = scmp.eq.s32.totalorder %s20, 1
      %p132 = por %p130, %p131
      %p134 = scmp.ne.s32.totalorder %s119, %s133
      %p135 = scmp.eq.s32.totalorder %s20, 0
      %p136 = por %p134, %p135
      %s137 = ssub.s32 %s14, %s21
      %p138 = scmp.eq.s32.totalorder %s137, 0
      %s140 = sadd.s32 %s139, 1
      %s141 = scalar_select %p138, %s139, %s140
      %p144 = pneg %p138
      %p145 = scmp.eq.s32.totalorder %s14, 1
      %p146 = por %p144, %p145
      %p147 = scmp.ne.s32.totalorder %s139, %s142
      %p148 = scmp.eq.s32.totalorder %s14, 0
      %p149 = por %p147, %p148
      %p150 = scmp.ne.s32.totalorder %s139, %s142
      %p151 = scmp.eq.s32.totalorder %s19, 1
      %p152 = por %p150, %p151
      %p153 = scmp.ne.s32.totalorder %s142, %s143
      %p154 = scmp.eq.s32.totalorder %s19, 0
      %p155 = por %p153, %p154
      %p156 = scmp.ne.s32.totalorder %s142, %s143
      %p157 = scmp.eq.s32.totalorder %s20, 1
      %p158 = por %p156, %p157
      %p160 = scmp.ne.s32.totalorder %s143, %s159
      %p161 = scmp.eq.s32.totalorder %s20, 0
      %p162 = por %p160, %p161
      %p163 = scmp.le.s32.totalorder 1, %s14
      %p164 = scmp.lt.s32.totalorder %s14, 3
      %p165 = pnand %p163, %p164
      %p166 = pneg %p165
      // Predicated region
      $region9: #{tpu_custom_call.1} parent=5 // pred_check
        _
      $region10: #{tpu_custom_call.1} parent=5 // pred_check_branch
        %168 = sbr.rel (%p165) target = $region12
      $region11: #{tpu_custom_call.1} parent=5 // pred_region
        %s169 = ssub.s32 %s14, 1
        // Predicated region
        $region13: #{tpu_custom_call.1} parent=11 // pred_check
          %p170 = pneg %p87
        $region14: #{tpu_custom_call.1} parent=11 // pred_check_branch
          %172 = sbr.rel (%p170) target = $region16
        $region15: #{tpu_custom_call.1} parent=11 // pred_region
          _
        $region16: #{tpu_custom_call.1} parent=11 // pred_fallthru
          _
        // Predicated region
        $region17: #{tpu_custom_call.1} parent=11 // pred_check
          %p173 = pneg %p108
        $region18: #{tpu_custom_call.1} parent=11 // pred_check_branch
          %175 = sbr.rel (%p173) target = $region20
        $region19: #{tpu_custom_call.1} parent=11 // pred_region
          _
        $region20: #{tpu_custom_call.1} parent=11 // pred_fallthru
          _
        // Predicated region
        $region21: #{tpu_custom_call.1} parent=11 // pred_check
          %p176 = pneg %p129
        $region22: #{tpu_custom_call.1} parent=11 // pred_check_branch
          %178 = sbr.rel (%p176) target = $region24
        $region23: #{tpu_custom_call.1} parent=11 // pred_region
          _
        $region24: #{tpu_custom_call.1} parent=11 // pred_fallthru
          _
      $region12: #{tpu_custom_call.1} parent=5 // pred_fallthru
        _
      %p179 = scmp.lt.s32.totalorder %s14, 2
      // Predicated region
      $region25: #{tpu_custom_call.1} parent=5 // pred_check
        %p180 = pneg %p179
      $region26: #{tpu_custom_call.1} parent=5 // pred_check_branch
        %182 = sbr.rel (%p180) target = $region28
      $region27: #{tpu_custom_call.1} parent=5 // pred_region
        // Predicated region
        $region29: #{tpu_custom_call.1} parent=27 // pred_check
          %p183 = pneg %p34
        $region30: #{tpu_custom_call.1} parent=27 // pred_check_branch
          %185 = sbr.rel (%p183) target = $region32
        $region31: #{tpu_custom_call.1} parent=27 // pred_region
          %p186 = scmp.lt.s32.totalorder %s14, 1
          %s187 = scalar_select %p186, %s14, 1
          %s188 = smul.addr %s187, 8
          %s189 = scalar_lea.vmem %s0, %s188
        $region32: #{tpu_custom_call.1} parent=27 // pred_fallthru
          _
        // Predicated region
        $region33: #{tpu_custom_call.1} parent=27 // pred_check
          %p190 = pneg %p60
        $region34: #{tpu_custom_call.1} parent=27 // pred_check_branch
          %192 = sbr.rel (%p190) target = $region36
        $region35: #{tpu_custom_call.1} parent=27 // pred_region
          %p193 = scmp.lt.s32.totalorder %s14, 1
          %s194 = scalar_select %p193, %s14, 1
          %s195 = smul.addr %s194, 8
          %s196 = scalar_lea.vmem %s1, %s195
        $region36: #{tpu_custom_call.1} parent=27 // pred_fallthru
          _
      $region28: #{tpu_custom_call.1} parent=5 // pred_fallthru
        _
      %p197 = scmp.le.s32.totalorder 1, %s14
      %p198 = scmp.lt.s32.totalorder %s14, 3
      %p199 = pnand %p197, %p198
      %p200 = pneg %p199
      // Predicated region
      $region37: #{tpu_custom_call.1} parent=5 // pred_check
        _
      $region38: #{tpu_custom_call.1} parent=5 // pred_check_branch
        %202 = sbr.rel (%p199) target = $region40
      $region39: #{tpu_custom_call.1} parent=5 // pred_region
        %s203 = ssub.s32 %s14, 1
        %p204 = scmp.lt.s32.totalorder %s19, 1
        %s205 = scalar_select %p204, %s19, 1
        %s206 = smul.addr %s205, 8
        %s207 = scalar_lea.vmem %s0, %s206
        %p208 = pneg %p40
        %p209 = pneg %p37
        %p210 = scmp.lt.s32.totalorder %s19, 1
        %s211 = scalar_select %p210, %s19, 1
        %s212 = smul.addr %s211, 8
        %s213 = scalar_lea.vmem %s1, %s212
        %p214 = pneg %p66
        %p215 = pneg %p63
        %p216 = pneg %p87
        %p217 = pneg %p84
        %p218 = pneg %p108
        %p219 = pneg %p105
        %p220 = pneg %p129
        %p221 = pneg %p126
        %p222 = pneg %p155
        %p223 = pneg %p152
        %s224 = sand.u32 %s142, 1
        %s225 = scalar_lea.sflag [#allocation3], %s224
        %s226 = sand.u32 %s142, 1
        %s227 = smul.addr %s226, 8
        %s228 = scalar_lea.vmem [#allocation2], %s227
        %p229 = scmp.lt.s32.totalorder %s19, 1
        %s230 = scalar_select %p229, %s19, 1
        %s231 = smul.addr %s230, 8
        %s232 = scalar_lea.vmem %s0, %s231
        %p233 = scmp.lt.s32.totalorder %s19, 1
        %s234 = scalar_select %p233, %s19, 1
        %s235 = smul.addr %s234, 8
        %s236 = scalar_lea.vmem %s1, %s235
        %v237 = vlaneseq
        %v238 = vand.u32 %v237, 127
        %v239 = vld [vmem:[%s232] sm:$0xff]
        %240 = vset.pattern.permute.xlu0 0
        %241 = vperm.xlu0 %240, %v239
        %v242 = vpop.permute.xlu0 %241
        %vm243 = vcmp.eq.s32.totalorder %v238, %v242
        %244 = vset.pattern.permute.xlu0 1
        %245 = vperm.xlu0 %244, %v239
        %v246 = vpop.permute.xlu0 %245
        %vm247 = vcmp.eq.s32.totalorder %v238, %v246
        %vm248 = vmor %vm243, %vm247
        %249 = vset.pattern.permute.xlu0 2
        %250 = vperm.xlu0 %249, %v239
        %v251 = vpop.permute.xlu0 %250
        %vm252 = vcmp.eq.s32.totalorder %v238, %v251
        %vm253 = vmor %vm248, %vm252
        %v254 = vsel %vm253, 1, 0
        %v255 = vcvt.s32.f32 %v254
        %v256 = vld [vmem:[%s2] sm:$0xff]
        %v257 = vld [vmem:[%s2 + $0x8] sm:$0xff]
        %v258 = vld [vmem:[%s2 + $0x10] sm:$0xff]
        %v259 = vld [vmem:[%s2 + $0x18] sm:$0xff]
        %v260 = vld [vmem:[%s2 + $0x20] sm:$0xff]
        %v261 = vld [vmem:[%s2 + $0x28] sm:$0xff]
        %v262 = vld [vmem:[%s2 + $0x30] sm:$0xff]
        %v263 = vld [vmem:[%s2 + $0x38] sm:$0xff]
        %v264 = vld [vmem:[%s236] sm:$0xff]
        %v265 = vld [vmem:[%s3] sm:$0xff]
        %v266 = vld [vmem:[%s3 + $0x8] sm:$0xff]
        %vm267 = vcmask 130048
        %v269 = vsel %vm267, %v264, 0
        %271 = vmatprep.subr.mxu0 0.0
        %272 = vmatpush1.msra.mxu0 %v265
        %273 = vmatprep.subr.mxu0 0.0
        %274 = vmatpush1.msra.mxu0 %v266
        %275 = vmatprep.subr.mxu0 0.0
        %276 = vmatpush1.msra.mxu0 0.0
        %277 = vmatprep.subr.mxu0 0.0
        %278 = vmatpush1.msra.mxu0 0.0
        %279 = vmatprep.subr.mxu0 0.0
        %280 = vmatpush1.msra.mxu0 0.0
        %281 = vmatprep.subr.mxu0 0.0
        %282 = vmatpush1.msra.mxu0 0.0
        %283 = vmatprep.subr.mxu0 0.0
        %284 = vmatpush1.msra.mxu0 0.0
        %285 = vmatprep.subr.mxu0 0.0
        %286 = vmatpush1.msra.mxu0 0.0
        %287 = vmatprep.subr.mxu0 0.0
        %288 = vmatpush1.msra.mxu0 0.0
        %289 = vmatprep.subr.mxu0 0.0
        %290 = vmatpush1.msra.mxu0 0.0
        %291 = vmatprep.subr.mxu0 0.0
        %292 = vmatpush1.msra.mxu0 0.0
        %293 = vmatprep.subr.mxu0 0.0
        %294 = vmatpush1.msra.mxu0 0.0
        %295 = vmatprep.subr.mxu0 0.0
        %296 = vmatpush1.msra.mxu0 0.0
        %297 = vmatprep.subr.mxu0 0.0
        %298 = vmatpush1.msra.mxu0 0.0
        %299 = vmatprep.subr.mxu0 0.0
        %300 = vmatpush1.msra.mxu0 0.0
        %301 = vmatprep.subr.mxu0 0.0
        %302 = vmatpush1.msra.mxu0 0.0
        %303 = vmatprep.subr.mxu0 0.0
        %304 = vmatpush1.msra.mxu0 0.0
        %305 = vmatprep.subr.mxu0 0.0
        %306 = vmatpush1.msra.mxu0 0.0
        %307 = vmatprep.subr.mxu0 0.0
        %308 = vmatpush1.msra.mxu0 0.0
        %309 = vmatprep.subr.mxu0 0.0
        %310 = vmatpush1.msra.mxu0 0.0
        %311 = vmatprep.subr.mxu0 0.0
        %312 = vmatpush1.msra.mxu0 0.0
        %313 = vmatprep.subr.mxu0 0.0
        %314 = vmatpush1.msra.mxu0 0.0
        %315 = vmatprep.subr.mxu0 0.0
        %316 = vmatpush1.msra.mxu0 0.0
        %317 = vmatprep.subr.mxu0 0.0
        %318 = vmatpush1.msra.mxu0 0.0
        %319 = vmatprep.subr.mxu0 0.0
        %320 = vmatpush1.msra.mxu0 0.0
        %321 = vmatprep.subr.mxu0 0.0
        %322 = vmatpush1.msra.mxu0 0.0
        %323 = vmatprep.subr.mxu0 0.0
        %324 = vmatpush1.msra.mxu0 0.0
        %325 = vmatprep.subr.mxu0 0.0
        %326 = vmatpush1.msra.mxu0 0.0
        %327 = vmatprep.subr.mxu0 0.0
        %328 = vmatpush1.msra.mxu0 0.0
        %329 = vmatprep.subr.mxu0 0.0
        %330 = vmatpush1.msra.mxu0 0.0
        %331 = vmatprep.subr.mxu0 0.0
        %332 = vmatpush1.msra.mxu0 0.0
        %333 = vmatprep.subr.mxu0 0.0
        %334 = vmatpush1.msra.mxu0 0.0
        %335 = vmatprep.mubr.f32.mxu0 0.0
        %336 = vmatmul.mubr.f32.gmra.mrb[0].mxu0 %v269
        %v337 = vpop.f32.mrb[0].mxu0
        %v338 = vadd.f32 0.0, %v337
        %v339 = vpop.f32.mrb[0].mxu0
        %340 = vdwg.mxu0
        %vm341 = vcmask 523264
        %v343 = vsel %vm341, %v255, 0
        %345 = vmatprep.subr.mxu0 0.0
        %346 = vmatpush1.msra.mxu0 %v256
        %347 = vmatprep.subr.mxu0 0.0
        %348 = vmatpush1.msra.mxu0 %v257
        %349 = vmatprep.subr.mxu0 0.0
        %350 = vmatpush1.msra.mxu0 %v258
        %351 = vmatprep.subr.mxu0 0.0
        %352 = vmatpush1.msra.mxu0 %v259
        %353 = vmatprep.subr.mxu0 0.0
        %354 = vmatpush1.msra.mxu0 %v260
        %355 = vmatprep.subr.mxu0 0.0
        %356 = vmatpush1.msra.mxu0 %v261
        %357 = vmatprep.subr.mxu0 0.0
        %358 = vmatpush1.msra.mxu0 %v262
        %359 = vmatprep.subr.mxu0 0.0
        %360 = vmatpush1.msra.mxu0 %v263
        %361 = vmatprep.subr.mxu0 0.0
        %362 = vmatpush1.msra.mxu0 0.0
        %363 = vmatprep.subr.mxu0 0.0
        %364 = vmatpush1.msra.mxu0 0.0
        %365 = vmatprep.subr.mxu0 0.0
        %366 = vmatpush1.msra.mxu0 0.0
        %367 = vmatprep.subr.mxu0 0.0
        %368 = vmatpush1.msra.mxu0 0.0
        %369 = vmatprep.subr.mxu0 0.0
        %370 = vmatpush1.msra.mxu0 0.0
        %371 = vmatprep.subr.mxu0 0.0
        %372 = vmatpush1.msra.mxu0 0.0
        %373 = vmatprep.subr.mxu0 0.0
        %374 = vmatpush1.msra.mxu0 0.0
        %375 = vmatprep.subr.mxu0 0.0
        %376 = vmatpush1.msra.mxu0 0.0
        %377 = vmatprep.subr.mxu0 0.0
        %378 = vmatpush1.msra.mxu0 0.0
        %379 = vmatprep.subr.mxu0 0.0
        %380 = vmatpush1.msra.mxu0 0.0
        %381 = vmatprep.subr.mxu0 0.0
        %382 = vmatpush1.msra.mxu0 0.0
        %383 = vmatprep.subr.mxu0 0.0
        %384 = vmatpush1.msra.mxu0 0.0
        %385 = vmatprep.subr.mxu0 0.0
        %386 = vmatpush1.msra.mxu0 0.0
        %387 = vmatprep.subr.mxu0 0.0
        %388 = vmatpush1.msra.mxu0 0.0
        %389 = vmatprep.subr.mxu0 0.0
        %390 = vmatpush1.msra.mxu0 0.0
        %391 = vmatprep.subr.mxu0 0.0
        %392 = vmatpush1.msra.mxu0 0.0
        %393 = vmatprep.subr.mxu0 0.0
        %394 = vmatpush1.msra.mxu0 0.0
        %395 = vmatprep.subr.mxu0 0.0
        %396 = vmatpush1.msra.mxu0 0.0
        %397 = vmatprep.subr.mxu0 0.0
        %398 = vmatpush1.msra.mxu0 0.0
        %399 = vmatprep.subr.mxu0 0.0
        %400 = vmatpush1.msra.mxu0 0.0
        %401 = vmatprep.subr.mxu0 0.0
        %402 = vmatpush1.msra.mxu0 0.0
        %403 = vmatprep.subr.mxu0 0.0
        %404 = vmatpush1.msra.mxu0 0.0
        %405 = vmatprep.subr.mxu0 0.0
        %406 = vmatpush1.msra.mxu0 0.0
        %407 = vmatprep.subr.mxu0 0.0
        %408 = vmatpush1.msra.mxu0 0.0
        %409 = vmatprep.mubr.f32.mxu0 0.0
        %410 = vmatmul.mubr.f32.gmra.mrb[0].mxu0 %v343
        %v411 = vpop.f32.mrb[0].mxu0
        %v412 = vadd.f32 %v338, %v411
        %v413 = vpop.f32.mrb[0].mxu0
        %414 = vdwg.mxu0
        %v415 = vld [vmem:[%s4] sm:$0x1]
        %v417 = vlaneseq
        %v418 = vshrl.u32 %v417, 7
        %v419 = vsub.s32 0, %v418
        %v420 = vrot.slane %v415, %v419
        %v422 = vadd.f32 %v412, %v420
        %vm423 = vcmask 261120
        %424 = vst.msk [vmem:[%s228] sm:$0xff] %vm423, %v422
        %s425 = sand.u32 %s142, 1
        %s426 = scalar_lea.sflag [#allocation3], %s425
        %s427 = sand.u32 %s142, 1
        %s428 = smul.addr %s427, 8
        %s429 = scalar_lea.vmem [#allocation2], %s428
        // Predicated region
        $region41: #{tpu_custom_call.1} parent=39 // pred_check
          %p430 = pneg %p152
        $region42: #{tpu_custom_call.1} parent=39 // pred_check_branch
          %432 = sbr.rel (%p430) target = $region44
        $region43: #{tpu_custom_call.1} parent=39 // pred_region
          %s434 = ssub.s32 128, 128
          %435 = vsyncadd %s426, %s434
          %s436 = smul.addr %s19, 128
          %s437 = scalar_lea.hbm %s5, %s436
          %s439 = sshll.u32 %s429, 4
          %s440 = int_to_ptr.vmem [resolvable:$true] %s439
          %442 = dma.vmem_to_hbm [thread:$0]  %s440, 128, %s437, %s426
        $region44: #{tpu_custom_call.1} parent=39 // pred_fallthru
          _
      $region40: #{tpu_custom_call.1} parent=5 // pred_fallthru
        _
      %p443 = scmp.le.s32.totalorder 2, %s14
      // Predicated region
      $region45: #{tpu_custom_call.1} parent=5 // pred_check
        %p444 = pneg %p443
      $region46: #{tpu_custom_call.1} parent=5 // pred_check_branch
        %446 = sbr.rel (%p444) target = $region48
      $region47: #{tpu_custom_call.1} parent=5 // pred_region
        %s447 = ssub.s32 %s14, 2
        // Predicated region
        $region49: #{tpu_custom_call.1} parent=47 // pred_check
          %p448 = pneg %p158
        $region50: #{tpu_custom_call.1} parent=47 // pred_check_branch
          %450 = sbr.rel (%p448) target = $region52
        $region51: #{tpu_custom_call.1} parent=47 // pred_region
          %s451 = sand.u32 %s143, 1
          %s452 = scalar_lea.sflag [#allocation3], %s451
          %s453 = sand.u32 %s143, 1
          %s454 = smul.addr %s453, 8
          %s455 = scalar_lea.vmem [#allocation2], %s454
          %456 = dma.done %s452, 128
        $region52: #{tpu_custom_call.1} parent=47 // pred_fallthru
          _
      $region48: #{tpu_custom_call.1} parent=5 // pred_fallthru
        _
    $region6: #{tpu_custom_call.1} parent=1 // loop_footer
      %s18 = sadd.s32 1, %s14
    $region7: #{tpu_custom_call.1} parent=1 // loop_footer_branch
      %13 = sbr.rel target = $region3
    $region8: #{tpu_custom_call.1} parent=1 // loop_exit
      _
    %457 = vsyncpa [#allocation3], 1
    %s458 = scalar_lea.sflag [#allocation3], 1
    %459 = vsyncpa %s458, 1

</llo_original>
